<compile_context>
chip_gen: v6e
topology: v6e:2x2x1
jax: 0.10.0
libtpu: 0.0.40
codegen_flags: <defaults>
</compile_context>

<pallas_src>
import jax
import jax.numpy as jnp
from jax.experimental import pallas as pl
from jax.experimental.pallas import tpu as pltpu

EPS = 1e-5


def _round_up(n, m):
    return (n + m - 1) // m * m


def _choose_row_tiling(n_rows, tile_rows, *, min_tiles=2):
    """Pick (tm, n_tiles, n_rows_padded).

    * >= 2 row tiles when the problem has >= 16 rows (megacore sharding on v7x).
    * tm derived from the tile count so padding waste is < 8 rows per tile.
    """
    want = min_tiles if n_rows >= 2 * 8 else 1
    nt = max(pl.cdiv(n_rows, tile_rows), want)
    tm = _round_up(pl.cdiv(n_rows, nt), 8)
    nt = pl.cdiv(n_rows, tm)
    return tm, nt, nt * tm


def _ln_rows_f32(x_f32, gb_f32):
    """One-pass LayerNorm over the last axis. x_f32: (tm, D), gb_f32: (2, D)."""
    inv_d = 1.0 / x_f32.shape[-1]
    mean = jnp.sum(x_f32, axis=-1, keepdims=True) * inv_d
    mean_sq = jnp.sum(x_f32 * x_f32, axis=-1, keepdims=True) * inv_d
    var = jnp.maximum(mean_sq - mean * mean, 0.0)       # biased, clamp fp error
    inv = jax.lax.rsqrt(var + EPS)
    return (x_f32 - mean) * inv * gb_f32[0:1, :] + gb_f32[1:2, :]


# ---------------------------------------------------------------------------
# Fused PreNorm + Linear kernel:  out = LayerNorm(x) @ W + b
#   grid = (row tiles i, output-col tiles j); LN is computed once per row tile
#   (at j == 0) into a VMEM scratch (bf16) and reused for every column tile.
# ---------------------------------------------------------------------------
def _fused_prenorm_linear_kernel(x_ref, gb_ref, w_ref, b_ref, o_ref, xn_ref):
    j = pl.program_id(1)

    # NOTE: xn_ref reuse across j is only valid because j is the INNERMOST grid
    # axis and is marked "arbitrary" (sequential): LN is written at j == 0
    # before any j > 0 iteration of the same row tile reads it on this core.
    @pl.when(j == 0)
    def _():
        y = _ln_rows_f32(x_ref[...].astype(jnp.float32),
                         gb_ref[...].astype(jnp.float32))
        xn_ref[...] = y.astype(xn_ref.dtype)

    acc = jnp.dot(xn_ref[...], w_ref[...],
                  preferred_element_type=jnp.float32)       # (tm, tn) f32 acc
    o_ref[...] = (acc + b_ref[...]).astype(o_ref.dtype)


def pre_norm_linear(x, gamma, beta, w, b, *,
                    tile_rows=512, mm_dtype=jnp.bfloat16,
                    w_resident_bytes=8 << 20):
    """Fused fn(LayerNorm(x)) for fn = Linear(D, D_out).

    x: (B, S, D); gamma/beta: (D,); w: (D, D_out); b: (D_out,).
    Matmul runs in `mm_dtype` (bf16) with f32 accumulation; LN math is f32.
    """
    B, S, D = x.shape
    D_out = w.shape[1]
    N = B * S
    x2d = x.reshape(N, D)

    # --- lane-dense output columns: pad W/b up to a multiple of 128 ---------
    D_out_pad = _round_up(D_out, 128)
    w_mm = w.astype(mm_dtype)
    b_f32 = b.astype(jnp.float32)
    if D_out_pad != D_out:
        w_mm = jnp.pad(w_mm, ((0, 0), (0, D_out_pad - D_out)))
        b_f32 = jnp.pad(b_f32, ((0, D_out_pad - D_out),))
    b2d = b_f32.reshape(1, D_out_pad)

    # --- row tiling (padding bounded to < 8 rows per tile) ------------------
    tm, n_row_tiles, N_pad = _choose_row_tiling(N, tile_rows)
    if N_pad != N:
        x2d = jnp.pad(x2d, ((0, N_pad - N), (0, 0)))   # LN(0)=beta rows, sliced off

    # --- weight residency / output-column tiling ----------------------------
    w_bytes = D * D_out_pad * jnp.dtype(mm_dtype).itemsize
    if w_bytes <= w_resident_bytes:
        tn = D_out_pad
        w_map = lambda i, j: (0, 0)      # constant block index: W fetched ONCE
    else:
        if D_out_pad % 512 == 0:
            tn = 512
        elif D_out_pad % 256 == 0:
            tn = 256                      # fills the 256x256 MXU on v6e/v7x
        else:
            tn = 128
        w_map = lambda i, j: (0, j)
    n_col_tiles = D_out_pad // tn

    gb = jnp.stack([gamma, beta], axis=0).astype(jnp.float32)   # (2, D)

    # xn scratch validity requires j innermost + "arbitrary" (see kernel note).
    dim_sem = ("parallel", "arbitrary")
    assert dim_sem[-1] == "arbitrary", "column axis must stay sequential"

    out_dtype = x.dtype
    est = (2 * tm * D * jnp.dtype(x2d.dtype).itemsize                 # x dbl-buf
           + (1 if tn == D_out_pad else 2) * D * tn * jnp.dtype(mm_dtype).itemsize
           + 2 * tm * tn * jnp.dtype(out_dtype).itemsize              # out dbl-buf
           + tm * D * jnp.dtype(mm_dtype).itemsize                    # xn scratch
           + 2 * D * 4 + 2 * tn * 4)                                  # gb + bias
    vmem_limit = int(min(max(2 * est + (8 << 20), 32 << 20), 64 << 20))

    out = pl.pallas_call(
        _fused_prenorm_linear_kernel,
        out_shape=jax.ShapeDtypeStruct((N_pad, D_out_pad), out_dtype),
        grid_spec=pltpu.PrefetchScalarGridSpec(
            num_scalar_prefetch=0,
            grid=(n_row_tiles, n_col_tiles),
            in_specs=[
                pl.BlockSpec((tm, D), lambda i, j: (i, 0)),   # x row tile
                pl.BlockSpec((2, D), lambda i, j: (0, 0)),    # packed gamma/beta
                pl.BlockSpec((D, tn), w_map),                 # weight (resident or col tile)
                pl.BlockSpec((1, tn), lambda i, j: (0, j)),   # bias col tile
            ],
            out_specs=pl.BlockSpec((tm, tn), lambda i, j: (i, j)),
            scratch_shapes=[pltpu.VMEM((tm, D), mm_dtype)],   # normalized tile
        ),
        compiler_params=pltpu.CompilerParams(
            dimension_semantics=dim_sem,
            vmem_limit_bytes=vmem_limit),
    )(x2d, gb, w_mm, b2d)

    if N_pad != N:
        out = out[:N]
    if D_out_pad != D_out:
        out = out[:, :D_out]
    return out.reshape(B, S, D_out)


# ---------------------------------------------------------------------------
# Standalone LayerNorm kernel (for PreNorm with an arbitrary `fn`)
# ---------------------------------------------------------------------------
def _layernorm_kernel(x_ref, gb_ref, o_ref):
    y = _ln_rows_f32(x_ref[...].astype(jnp.float32),
                     gb_ref[...].astype(jnp.float32))
    o_ref[...] = y.astype(o_ref.dtype)


def layernorm_pallas(x2d, gamma, beta, *, tile_rows=512):
    """x2d: (N, D); gamma/beta: (D,). LayerNorm over the last axis."""
    N, D = x2d.shape
    tm, n_tiles, N_pad = _choose_row_tiling(N, tile_rows)
    x_p = jnp.pad(x2d, ((0, N_pad - N), (0, 0))) if N_pad != N else x2d
    gb = jnp.stack([gamma, beta], axis=0).astype(jnp.float32)

    itm = jnp.dtype(x2d.dtype).itemsize
    est = 4 * tm * D * itm + 2 * D * 4          # x + out double-buffered + gb
    vmem_limit = int(min(max(2 * est + (8 << 20), 32 << 20), 64 << 20))

    out = pl.pallas_call(
        _layernorm_kernel,
        out_shape=jax.ShapeDtypeStruct((N_pad, D), x2d.dtype),
        grid_spec=pltpu.PrefetchScalarGridSpec(
            num_scalar_prefetch=0,
            grid=(n_tiles,),
            in_specs=[
                pl.BlockSpec((tm, D), lambda i: (i, 0)),
                pl.BlockSpec((2, D), lambda i: (0, 0)),
            ],
            out_specs=pl.BlockSpec((tm, D), lambda i: (i, 0)),
        ),
        compiler_params=pltpu.CompilerParams(
            dimension_semantics=("parallel",),
            vmem_limit_bytes=vmem_limit),
    )(x_p, gb)
    return out[:N] if N_pad != N else out


def pre_norm(x, gamma, beta, fn, *, tile_rows=512):
    """Generic PreNorm: fn(LayerNorm(x)) with an arbitrary callable fn."""
    B, S, D = x.shape
    normed = layernorm_pallas(x.reshape(B * S, D), gamma, beta,
                              tile_rows=tile_rows)
    return fn(normed).reshape(B, S, -1)


# ---------------------------------------------------------------------------
# Pure-JAX references
# ---------------------------------------------------------------------------
def _ln_ref(x, gamma, beta):
    mean = jnp.mean(x, axis=-1, keepdims=True)
    var = jnp.mean((x - mean) ** 2, axis=-1, keepdims=True)
    return (x - mean) * jax.lax.rsqrt(var + EPS) * gamma + beta


def pre_norm_linear_ref_f32(x, gamma, beta, w, b):
    return _ln_ref(x, gamma, beta) @ w + b


def pre_norm_linear_ref_bf16(x, gamma, beta, w, b, mm_dtype=jnp.bfloat16):
    B, S, D = x.shape
    normed = _ln_ref(x, gamma, beta).astype(mm_dtype).reshape(B * S, D)
    acc = jnp.dot(normed, w.astype(mm_dtype),
                  preferred_element_type=jnp.float32)
    return (acc + b).reshape(B, S, -1)


if __name__ == "__main__":
    key = jax.random.PRNGKey(0)
    k_x, k_g, k_b, k_w, k_wb = jax.random.split(key, 5)

    # D = 128 keeps the last dim lane-dense; N = 16 rows -> 2 row tiles of 8.
    B, S, D = 2, 8, 128
    x = jax.random.normal(k_x, (B, S, D), dtype=jnp.float32)

    # nn.LayerNorm(dim) params: weight (D,), bias (D,)
    gamma = 1.0 + 0.1 * jax.random.normal(k_g, (D,), dtype=jnp.float32)
    beta = 0.1 * jax.random.normal(k_b, (D,), dtype=jnp.float32)

    # Example fn = Linear(D, D)  (bf16 matmul deviates from f32 torch Linear by
    # design -- precision choice, checked against both bf16 and f32 refs).
    w = jax.random.normal(k_w, (D, D), dtype=jnp.float32) / jnp.sqrt(D)
    wb = 0.01 * jax.random.normal(k_wb, (D,), dtype=jnp.float32)

    # --- fused PreNorm + Linear (main, optimized path) ---
    out = pre_norm_linear(x, gamma, beta, w, wb)
    out = jax.block_until_ready(out)
    assert out.shape == (B, S, D)

    ref16 = pre_norm_linear_ref_bf16(x, gamma, beta, w, wb)
    ref32 = pre_norm_linear_ref_f32(x, gamma, beta, w, wb)
    assert jnp.allclose(out, ref16, atol=5e-3, rtol=5e-3), "fused vs bf16 ref"
    assert jnp.allclose(out, ref32, atol=5e-2, rtol=5e-2), "fused vs f32 ref"

    # --- generic PreNorm path (standalone LN kernel + arbitrary fn) ---
    fn = lambda z: z @ w + wb        # PreNorm is agnostic to fn
    out2 = pre_norm(x, gamma, beta, fn)
    out2 = jax.block_until_ready(out2)
    assert jnp.allclose(out2, ref32, atol=1e-4, rtol=1e-4), "generic vs f32 ref"

    print("KERNEL_OK")
</pallas_src>

<mosaic_0001>
module attributes {stable_mosaic.version = 11 : i64} {
  func.func @_fused_prenorm_linear_kernel(%arg0: i32, %arg1: i32, %arg2: memref<8x128xf32, #tpu.memory_space<vmem>>, %arg3: memref<2x128xf32, #tpu.memory_space<vmem>>, %arg4: memref<128x128xbf16, #tpu.memory_space<vmem>>, %arg5: memref<1x128xf32, #tpu.memory_space<vmem>>, %arg6: memref<8x128xf32, #tpu.memory_space<vmem>>, %arg7: memref<8x128xbf16, #tpu.memory_space<vmem>>) attributes {dimension_semantics = [#tpu.dimension_semantics<parallel>, #tpu.dimension_semantics<arbitrary>], iteration_bounds = array<i64: 2, 1>, scalar_prefetch = 0 : i64, scratch_operands = 1 : i64, tpu.core_type = #tpu.core_type<tc>, window_params = [{transform_indices = @transform_0, window_bounds = array<i64: 8, 128>}, {pipeline_mode = #tpu.pipeline_mode<synchronous>, transform_indices = @transform_1, window_bounds = array<i64: 2, 128>}, {pipeline_mode = #tpu.pipeline_mode<synchronous>, transform_indices = @transform_2, window_bounds = array<i64: 128, 128>}, {transform_indices = @transform_3, window_bounds = array<i64: 1, 128>}, {transform_indices = @transform_4, window_bounds = array<i64: 8, 128>}]} {
    %c0_i32 = arith.constant 0 : i32
    %0 = arith.cmpi eq, %arg1, %c0_i32 : i32
    %1 = arith.extui %0 : i1 to i32
    %c0_i32_0 = arith.constant 0 : i32
    %2 = arith.cmpi ne, %1, %c0_i32_0 : i32
    scf.if %2 {
      %c0_8 = arith.constant 0 : index
      %c0_9 = arith.constant 0 : index
      %10 = vector.load %arg2[%c0_8, %c0_9] : memref<8x128xf32, #tpu.memory_space<vmem>>, vector<8x128xf32>
      %c0_10 = arith.constant 0 : index
      %c0_11 = arith.constant 0 : index
      %11 = vector.load %arg3[%c0_10, %c0_11] : memref<2x128xf32, #tpu.memory_space<vmem>>, vector<2x128xf32>
      %cst_12 = arith.constant dense<0.000000e+00> : vector<8xf32>
      %12 = vector.multi_reduction <add>, %10, %cst_12 [1] : vector<8x128xf32> to vector<8xf32>
      %13 = vector.shape_cast %12 : vector<8xf32> to vector<8x1xf32>
      %cst_13 = arith.constant 7.812500e-03 : f32
      %14 = vector.broadcast %cst_13 : f32 to vector<8x1xf32>
      %15 = arith.mulf %13, %14 : vector<8x1xf32>
      %16 = arith.mulf %10, %10 : vector<8x128xf32>
      %cst_14 = arith.constant dense<0.000000e+00> : vector<8xf32>
      %17 = vector.multi_reduction <add>, %16, %cst_14 [1] : vector<8x128xf32> to vector<8xf32>
      %18 = vector.shape_cast %17 : vector<8xf32> to vector<8x1xf32>
      %cst_15 = arith.constant 7.812500e-03 : f32
      %19 = vector.broadcast %cst_15 : f32 to vector<8x1xf32>
      %20 = arith.mulf %18, %19 : vector<8x1xf32>
      %21 = arith.mulf %15, %15 : vector<8x1xf32>
      %22 = arith.subf %20, %21 : vector<8x1xf32>
      %cst_16 = arith.constant 0.000000e+00 : f32
      %23 = vector.broadcast %cst_16 : f32 to vector<8x1xf32>
      %24 = arith.maximumf %22, %23 : vector<8x1xf32>
      %cst_17 = arith.constant 9.99999974E-6 : f32
      %25 = vector.broadcast %cst_17 : f32 to vector<8x1xf32>
      %26 = arith.addf %24, %25 : vector<8x1xf32>
      %27 = math.rsqrt %26 : vector<8x1xf32>
      %28 = vector.broadcast %15 : vector<8x1xf32> to vector<8x128xf32>
      %29 = arith.subf %10, %28 : vector<8x128xf32>
      %30 = vector.broadcast %27 : vector<8x1xf32> to vector<8x128xf32>
      %31 = arith.mulf %29, %30 : vector<8x128xf32>
      %32 = vector.extract_strided_slice %11 {offsets = [0, 0], sizes = [1, 128], strides = [1, 1]} : vector<2x128xf32> to vector<1x128xf32>
      %33 = vector.broadcast %32 : vector<1x128xf32> to vector<8x128xf32>
      %34 = arith.mulf %31, %33 : vector<8x128xf32>
      %35 = vector.extract_strided_slice %11 {offsets = [1, 0], sizes = [1, 128], strides = [1, 1]} : vector<2x128xf32> to vector<1x128xf32>
      %36 = vector.broadcast %35 : vector<1x128xf32> to vector<8x128xf32>
      %37 = arith.addf %34, %36 : vector<8x128xf32>
      %38 = arith.truncf %37 : vector<8x128xf32> to vector<8x128xbf16>
      %c0_18 = arith.constant 0 : index
      %c0_19 = arith.constant 0 : index
      %39 = vector.load %arg7[%c0_18, %c0_19] : memref<8x128xbf16, #tpu.memory_space<vmem>>, vector<8x128xbf16>
      tpu.vector_store %arg7[%c0_18, %c0_19], %38 {strides = array<i32>} : memref<8x128xbf16, #tpu.memory_space<vmem>>, vector<8x128xbf16>,
    } else {
    }
    %c0 = arith.constant 0 : index
    %c0_1 = arith.constant 0 : index
    %3 = vector.load %arg7[%c0, %c0_1] : memref<8x128xbf16, #tpu.memory_space<vmem>>, vector<8x128xbf16>
    %c0_2 = arith.constant 0 : index
    %c0_3 = arith.constant 0 : index
    %4 = vector.load %arg4[%c0_2, %c0_3] : memref<128x128xbf16, #tpu.memory_space<vmem>>, vector<128x128xbf16>
    %cst = arith.constant dense<0.000000e+00> : vector<8x128xf32>
    %5 = tpu.matmul %3, %4, %cst {dimension_numbers = #tpu.dot_dimension_numbers<[1], [0], [0], [1], [0, 0, 1, 1], [], []>} : vector<8x128xbf16>, vector<128x128xbf16>, vector<8x128xf32> -> vector<8x128xf32>
    %c0_4 = arith.constant 0 : index
    %c0_5 = arith.constant 0 : index
    %6 = vector.load %arg5[%c0_4, %c0_5] : memref<1x128xf32, #tpu.memory_space<vmem>>, vector<1x128xf32>
    %7 = vector.broadcast %6 : vector<1x128xf32> to vector<8x128xf32>
    %8 = arith.addf %5, %7 : vector<8x128xf32>
    %c0_6 = arith.constant 0 : index
    %c0_7 = arith.constant 0 : index
    %9 = vector.load %arg6[%c0_6, %c0_7] : memref<8x128xf32, #tpu.memory_space<vmem>>, vector<8x128xf32>
    tpu.vector_store %arg6[%c0_6, %c0_7], %8 {strides = array<i32>} : memref<8x128xf32, #tpu.memory_space<vmem>>, vector<8x128xf32>,
    return
  }
  func.func @transform_0(%arg0: i32, %arg1: i32) -> (i32, i32) {
    %c0_i32 = arith.constant 0 : i32
    %c0_i32_0 = arith.constant 0 : i32
    return %arg0, %c0_i32 : i32, i32
  }
  func.func @transform_1(%arg0: i32, %arg1: i32) -> (i32, i32) {
    %c0_i32 = arith.constant 0 : i32
    %c0_i32_0 = arith.constant 0 : i32
    %c0_i32_1 = arith.constant 0 : i32
    return %c0_i32, %c0_i32_0 : i32, i32
  }
  func.func @transform_2(%arg0: i32, %arg1: i32) -> (i32, i32) {
    %c0_i32 = arith.constant 0 : i32
    %c0_i32_0 = arith.constant 0 : i32
    %c0_i32_1 = arith.constant 0 : i32
    return %c0_i32, %c0_i32_0 : i32, i32
  }
  func.func @transform_3(%arg0: i32, %arg1: i32) -> (i32, i32) {
    %c0_i32 = arith.constant 0 : i32
    %c0_i32_0 = arith.constant 0 : i32
    return %c0_i32, %arg1 : i32, i32
  }
  func.func @transform_4(%arg0: i32, %arg1: i32) -> (i32, i32) {
    %c0_i32 = arith.constant 0 : i32
    return %arg0, %arg1 : i32, i32
  }
}

</mosaic_0001>

<llo_original>
// kernel: tpu_custom_call.1
$region0: #{tpu_custom_call.1}
  #allocation0 [shape = 'u32[]', space=smem, size = 0x4, offset = 0x4, fixed_abs, tag = 'smem constant byte address 0x4 - core index']
  #allocation1 [shape = 'u32[144,128]{1,0:T(1,128)}', space=vmem, size = 0x12000, scoped, tag = 'internal scratch']
  #allocation2 [shape = 'bf16[8,128]{1,0:T(8,128)(2,1)}', space=vmem, size = 0x800, scoped, tag = 'scratch operand']
  %s0 = inlined_call_operand.hbm [shape: f32[16,128], index: 0, kind: input, shape index: {}]
  %s1 = inlined_call_operand.hbm [shape: f32[2,128], index: 1, kind: input, shape index: {}]
  %s2 = inlined_call_operand.hbm [shape: bf16[128,128], index: 2, kind: input, shape index: {}]
  %s3 = inlined_call_operand.vmem [shape: f32[1,128], index: 3, kind: input, shape index: {}]
  %s4 = inlined_call_operand.hbm [shape: f32[16,128], index: 4, kind: output, shape index: {}]
  %s5 = sld [smem:[#allocation0]]
  $region65: #{tpu_custom_call.1} parent=0
    _
  %s7 = ssub.s32 1, %s5
  %s8 = scalar_select 0, %s7, %s5
  $region1: #{tpu_custom_call.1} parent=0
    #allocation3 [shape = 'u8[8192]{0}', space=vmem, size = 0x2000, scoped, tag = 'input window, operand 0']
    #allocation4 [shape = 's32[2]{0}', space=sflag, size = 0x8, scoped, tag = 'scoped memory for tpu_custom_call.1']
    #allocation5 [shape = 's32[2]{0}', space=sflag, size = 0x8, scoped, tag = 'scoped memory for tpu_custom_call.1']
    #allocation6 [shape = 'u8[1024]{0}', space=vmem, size = 0x400, scoped, tag = 'input window, operand 1, single buffered']
    #allocation7 [shape = 's32[1]{0}', space=sflag, size = 0x4, scoped, tag = 'scoped memory for tpu_custom_call.1']
    #allocation8 [shape = 'u8[32768]{0}', space=vmem, size = 0x8000, scoped, tag = 'input window, operand 2, single buffered']
    #allocation9 [shape = 'u8[8192]{0}', space=vmem, size = 0x2000, scoped, tag = 'output window, operand 0']
    %9 = vsyncpa [#allocation4], 0
    %s10 = scalar_lea.sflag [#allocation4], 1
    %11 = vsyncpa %s10, 0
    %12 = vsyncpa [#allocation7], 0
    %13 = vsyncpa [#allocation5], 0
    %s14 = scalar_lea.sflag [#allocation5], 1
    %15 = vsyncpa %s14, 0
    loop: start=0, step=1, limit=4
    $region2: #{tpu_custom_call.1} parent=1 // loop_pre_header
      _
    $region3: #{tpu_custom_call.1} parent=1 // loop_header
      %s17 = sphi 0, %s21
      %p18 = scmp.ge.s32.totalorder %s17, 4
      %s24 = sphi 0, %s36
      %s25 = sphi 0, %s32
      %s26 = sphi 0, %s24
      %s27 = sphi 0, %s25
      %s28 = sphi 0, %s26
      %s29 = sphi 0, %s27
      %s39 = sphi 0, %s41
      %s42 = sphi 0, %s39
      %s43 = sphi 0, %s42
      %s59 = sphi 0, %s43
      %s63 = sphi 0, %s63
      %s65 = sphi 0, %s63
      %s66 = sphi 0, %s65
      %s80 = sphi 0, %s66
      %s84 = sphi 0, %s84
      %s86 = sphi 0, %s84
      %s87 = sphi 0, %s86
      %s101 = sphi 0, %s87
      %s107 = sphi 0, %s109
      %s110 = sphi 0, %s107
      %s111 = sphi 0, %s110
      %s127 = sphi 0, %s111
      %s135 = sphi 0, %s137
      %s138 = sphi 0, %s135
      %s139 = sphi 0, %s138
      %s155 = sphi 0, %s139
    $region4: #{tpu_custom_call.1} parent=1 // loop_header_branch
      %20 = sbr.rel (%p18) target = $region8
    $region5: #{tpu_custom_call.1} parent=1 // loop_body
      %s22 = ssub.s32 %s17, 1
      %s23 = ssub.s32 %s17, 2
      %s30 = sadd.s32 1, %s25
      %p31 = scmp.ge.s32.totalorder %s30, 1
      %s32 = scalar_select %p31, 0, %s30
      %s33 = sadd.s32 1, %s24
      %s34 = scalar_select %p31, %s33, %s24
      %p35 = scmp.ge.s32.totalorder %s34, 2
      %s36 = scalar_select %p35, 0, %s34
      %s37 = ssub.s32 %s24, %s36
      %p38 = scmp.eq.s32.totalorder %s37, 0
      %s40 = sadd.s32 %s39, 1
      %s41 = scalar_select %p38, %s39, %s40
      %p44 = pneg %p38
      %p45 = scmp.eq.s32.totalorder %s17, 1
      %p46 = por %p44, %p45
      %p47 = scmp.ne.s32.totalorder %s39, %s42
      %p48 = scmp.eq.s32.totalorder %s17, 0
      %p49 = por %p47, %p48
      %p50 = scmp.ne.s32.totalorder %s39, %s42
      %p51 = scmp.eq.s32.totalorder %s22, 1
      %p52 = por %p50, %p51
      %p53 = scmp.ne.s32.totalorder %s42, %s43
      %p54 = scmp.eq.s32.totalorder %s22, 0
      %p55 = por %p53, %p54
      %p56 = scmp.ne.s32.totalorder %s42, %s43
      %p57 = scmp.eq.s32.totalorder %s23, 1
      %p58 = por %p56, %p57
      %p60 = scmp.ne.s32.totalorder %s43, %s59
      %p61 = scmp.eq.s32.totalorder %s23, 0
      %p62 = por %p60, %p61
      %s64 = sadd.s32 %s63, 1
      %p67 = scmp.eq.s32.totalorder %s17, 1
      %p68 = scmp.ne.s32.totalorder %s63, %s65
      %p69 = scmp.eq.s32.totalorder %s17, 0
      %p70 = por %p68, %p69
      %p71 = scmp.ne.s32.totalorder %s63, %s65
      %p72 = scmp.eq.s32.totalorder %s22, 1
      %p73 = por %p71, %p72
      %p74 = scmp.ne.s32.totalorder %s65, %s66
      %p75 = scmp.eq.s32.totalorder %s22, 0
      %p76 = por %p74, %p75
      %p77 = scmp.ne.s32.totalorder %s65, %s66
      %p78 = scmp.eq.s32.totalorder %s23, 1
      %p79 = por %p77, %p78
      %p81 = scmp.ne.s32.totalorder %s66, %s80
      %p82 = scmp.eq.s32.totalorder %s23, 0
      %p83 = por %p81, %p82
      %s85 = sadd.s32 %s84, 1
      %p88 = scmp.eq.s32.totalorder %s17, 1
      %p89 = scmp.ne.s32.totalorder %s84, %s86
      %p90 = scmp.eq.s32.totalorder %s17, 0
      %p91 = por %p89, %p90
      %p92 = scmp.ne.s32.totalorder %s84, %s86
      %p93 = scmp.eq.s32.totalorder %s22, 1
      %p94 = por %p92, %p93
      %p95 = scmp.ne.s32.totalorder %s86, %s87
      %p96 = scmp.eq.s32.totalorder %s22, 0
      %p97 = por %p95, %p96
      %p98 = scmp.ne.s32.totalorder %s86, %s87
      %p99 = scmp.eq.s32.totalorder %s23, 1
      %p100 = por %p98, %p99
      %p102 = scmp.ne.s32.totalorder %s87, %s101
      %p103 = scmp.eq.s32.totalorder %s23, 0
      %p104 = por %p102, %p103
      %s105 = ssub.s32 %s25, %s32
      %p106 = scmp.eq.s32.totalorder %s105, 0
      %s108 = sadd.s32 %s107, 1
      %s109 = scalar_select %p106, %s107, %s108
      %p112 = pneg %p106
      %p113 = scmp.eq.s32.totalorder %s17, 1
      %p114 = por %p112, %p113
      %p115 = scmp.ne.s32.totalorder %s107, %s110
      %p116 = scmp.eq.s32.totalorder %s17, 0
      %p117 = por %p115, %p116
      %p118 = scmp.ne.s32.totalorder %s107, %s110
      %p119 = scmp.eq.s32.totalorder %s22, 1
      %p120 = por %p118, %p119
      %p121 = scmp.ne.s32.totalorder %s110, %s111
      %p122 = scmp.eq.s32.totalorder %s22, 0
      %p123 = por %p121, %p122
      %p124 = scmp.ne.s32.totalorder %s110, %s111
      %p125 = scmp.eq.s32.totalorder %s23, 1
      %p126 = por %p124, %p125
      %p128 = scmp.ne.s32.totalorder %s111, %s127
      %p129 = scmp.eq.s32.totalorder %s23, 0
      %p130 = por %p128, %p129
      %s131 = ssub.s32 %s24, %s36
      %s132 = ssub.s32 %s25, %s32
      %s133 = sor.u32 %s131, %s132
      %p134 = scmp.eq.s32.totalorder %s133, 0
      %s136 = sadd.s32 %s135, 1
      %s137 = scalar_select %p134, %s135, %s136
      %p140 = pneg %p134
      %p141 = scmp.eq.s32.totalorder %s17, 1
      %p142 = por %p140, %p141
      %p143 = scmp.ne.s32.totalorder %s135, %s138
      %p144 = scmp.eq.s32.totalorder %s17, 0
      %p145 = por %p143, %p144
      %p146 = scmp.ne.s32.totalorder %s135, %s138
      %p147 = scmp.eq.s32.totalorder %s22, 1
      %p148 = por %p146, %p147
      %p149 = scmp.ne.s32.totalorder %s138, %s139
      %p150 = scmp.eq.s32.totalorder %s22, 0
      %p151 = por %p149, %p150
      %p152 = scmp.ne.s32.totalorder %s138, %s139
      %p153 = scmp.eq.s32.totalorder %s23, 1
      %p154 = por %p152, %p153
      %p156 = scmp.ne.s32.totalorder %s139, %s155
      %p157 = scmp.eq.s32.totalorder %s23, 0
      %p158 = por %p156, %p157
      %p159 = scmp.le.s32.totalorder 1, %s17
      %p160 = scmp.lt.s32.totalorder %s17, 3
      %p161 = pnand %p159, %p160
      %p162 = pneg %p161
      // Predicated region
      $region9: #{tpu_custom_call.1} parent=5 // pred_check
        _
      $region10: #{tpu_custom_call.1} parent=5 // pred_check_branch
        %164 = sbr.rel (%p161) target = $region12
      $region11: #{tpu_custom_call.1} parent=5 // pred_region
        %s165 = ssub.s32 %s17, 1
        // Predicated region
        $region13: #{tpu_custom_call.1} parent=11 // pred_check
          %p166 = pneg %p76
        $region14: #{tpu_custom_call.1} parent=11 // pred_check_branch
          %168 = sbr.rel (%p166) target = $region16
        $region15: #{tpu_custom_call.1} parent=11 // pred_region
          %s170 = ssub.s32 32, 32
          %171 = vsyncadd [#allocation7], %s170
          %s173 = sshll.u32 [#allocation6], 4
          %s174 = int_to_ptr.vmem [resolvable:$true] %s173
          %176 = dma.hbm_to_vmem [thread:$0]  %s1, 32, %s174, [#allocation7]
        $region16: #{tpu_custom_call.1} parent=11 // pred_fallthru
          _
        // Predicated region
        $region17: #{tpu_custom_call.1} parent=11 // pred_check
          %p177 = pneg %p97
        $region18: #{tpu_custom_call.1} parent=11 // pred_check_branch
          %179 = sbr.rel (%p177) target = $region20
        $region19: #{tpu_custom_call.1} parent=11 // pred_region
          %s181 = ssub.s32 1024, 1024
          %182 = vsyncadd [#allocation7], %s181
          %s183 = sshll.u32 [#allocation8], 4
          %s184 = int_to_ptr.vmem [resolvable:$true] %s183
          %189 = dma.hbm_to_vmem [thread:$0]  %s2, 1024, %s184, [#allocation7], 64, 64, 4
        $region20: #{tpu_custom_call.1} parent=11 // pred_fallthru
          _
        // Predicated region
        $region21: #{tpu_custom_call.1} parent=11 // pred_check
          %p190 = pneg %p123
        $region22: #{tpu_custom_call.1} parent=11 // pred_check_branch
          %192 = sbr.rel (%p190) target = $region24
        $region23: #{tpu_custom_call.1} parent=11 // pred_region
          %p193 = scmp.lt.s32.totalorder %s27, 0
          %s194 = scalar_select %p193, %s27, 0
          %s195 = scalar_lea.vmem %s3, %s194
        $region24: #{tpu_custom_call.1} parent=11 // pred_fallthru
          _
      $region12: #{tpu_custom_call.1} parent=5 // pred_fallthru
        _
      %p196 = scmp.lt.s32.totalorder %s17, 2
      // Predicated region
      $region25: #{tpu_custom_call.1} parent=5 // pred_check
        %p197 = pneg %p196
      $region26: #{tpu_custom_call.1} parent=5 // pred_check_branch
        %199 = sbr.rel (%p197) target = $region28
      $region27: #{tpu_custom_call.1} parent=5 // pred_region
        // Predicated region
        $region29: #{tpu_custom_call.1} parent=27 // pred_check
          %p200 = pneg %p49
        $region30: #{tpu_custom_call.1} parent=27 // pred_check_branch
          %202 = sbr.rel (%p200) target = $region32
        $region31: #{tpu_custom_call.1} parent=27 // pred_region
          %s203 = sand.u32 %s39, 1
          %s204 = scalar_lea.sflag [#allocation4], %s203
          %s205 = sand.u32 %s39, 1
          %s206 = smul.addr %s205, 8
          %s207 = scalar_lea.vmem [#allocation3], %s206
          %s209 = ssub.s32 128, 128
          %210 = vsyncadd %s204, %s209
          %s211 = smul.addr %s24, 128
          %s212 = scalar_lea.hbm %s0, %s211
          %s214 = sshll.u32 %s207, 4
          %s215 = int_to_ptr.vmem [resolvable:$true] %s214
          %217 = dma.hbm_to_vmem [thread:$0]  %s212, 128, %s215, %s204
        $region32: #{tpu_custom_call.1} parent=27 // pred_fallthru
          _
      $region28: #{tpu_custom_call.1} parent=5 // pred_fallthru
        _
      %p218 = scmp.le.s32.totalorder 1, %s17
      %p219 = scmp.lt.s32.totalorder %s17, 3
      %p220 = pnand %p218, %p219
      %p221 = pneg %p220
      // Predicated region
      $region33: #{tpu_custom_call.1} parent=5 // pred_check
        _
      $region34: #{tpu_custom_call.1} parent=5 // pred_check_branch
        %223 = sbr.rel (%p220) target = $region36
      $region35: #{tpu_custom_call.1} parent=5 // pred_region
        %s224 = ssub.s32 %s17, 1
        %s225 = sand.u32 %s42, 1
        %s226 = scalar_lea.sflag [#allocation4], %s225
        %s227 = sand.u32 %s42, 1
        %s228 = smul.addr %s227, 8
        %s229 = scalar_lea.vmem [#allocation3], %s228
        // Predicated region
        $region37: #{tpu_custom_call.1} parent=35 // pred_check
          %p230 = pneg %p55
        $region38: #{tpu_custom_call.1} parent=35 // pred_check_branch
          %232 = sbr.rel (%p230) target = $region40
        $region39: #{tpu_custom_call.1} parent=35 // pred_region
          %233 = dma.done %s226, 128
        $region40: #{tpu_custom_call.1} parent=35 // pred_fallthru
          _
        // Predicated region
        $region41: #{tpu_custom_call.1} parent=35 // pred_check
          %p234 = pneg %p76
        $region42: #{tpu_custom_call.1} parent=35 // pred_check_branch
          %236 = sbr.rel (%p234) target = $region44
        $region43: #{tpu_custom_call.1} parent=35 // pred_region
          %237 = dma.done [#allocation7], 32
        $region44: #{tpu_custom_call.1} parent=35 // pred_fallthru
          _
        // Predicated region
        $region45: #{tpu_custom_call.1} parent=35 // pred_check
          %p238 = pneg %p97
        $region46: #{tpu_custom_call.1} parent=35 // pred_check_branch
          %240 = sbr.rel (%p238) target = $region48
        $region47: #{tpu_custom_call.1} parent=35 // pred_region
          %241 = dma.done [#allocation7], 1024
        $region48: #{tpu_custom_call.1} parent=35 // pred_fallthru
          _
        %s242 = sand.u32 %s42, 1
        %s243 = scalar_lea.sflag [#allocation4], %s242
        %s244 = sand.u32 %s42, 1
        %s245 = smul.addr %s244, 8
        %s246 = scalar_lea.vmem [#allocation3], %s245
        %p247 = pneg %p55
        %p248 = pneg %p52
        %p249 = pneg %p76
        %p250 = pneg %p73
        %p251 = pneg %p97
        %p252 = pneg %p94
        %p253 = scmp.lt.s32.totalorder %s27, 0
        %s254 = scalar_select %p253, %s27, 0
        %s255 = scalar_lea.vmem %s3, %s254
        %p256 = pneg %p123
        %p257 = pneg %p120
        %p258 = pneg %p151
        %p259 = pneg %p148
        %s260 = sand.u32 %s138, 1
        %s261 = scalar_lea.sflag [#allocation5], %s260
        %s262 = sand.u32 %s138, 1
        %s263 = smul.addr %s262, 8
        %s264 = scalar_lea.vmem [#allocation9], %s263
        %p265 = scmp.lt.s32.totalorder %s27, 0
        %s266 = scalar_select %p265, %s27, 0
        %s267 = scalar_lea.vmem %s3, %s266
        %p269 = scmp.eq.s32.totalorder %s27, 0
        // Predicated region
        $region49: #{tpu_custom_call.1} parent=35 // pred_check
          %p270 = pneg %p269
        $region50: #{tpu_custom_call.1} parent=35 // pred_check_branch
          %272 = sbr.rel (%p270) target = $region52
        $region51: #{tpu_custom_call.1} parent=35 // pred_region
          %v273 = vld [vmem:[%s229] sm:$0xff]
          %v274 = vld [vmem:[#allocation6] sm:$0x3]
          %275 = vadd.xlane.f32.xlu0 %v273
          %v276 = vpop.xlane.xlu0 %275
          %v277 = vmul.f32 %v276, 0.0078125
          %v278 = vmul.f32 %v273, %v273
          %279 = vadd.xlane.f32.xlu0 %v278
          %v280 = vpop.xlane.xlu0 %279
          %v281 = vmul.f32 %v280, 0.0078125
          %v282 = vmul.f32 %v277, %v277
          %v283 = vsub.f32 %v281, %v282
          %v284 = vmax.f32 %v283, 0.0
          %v285 = vadd.f32 %v284, 1e-05
          %v286 = vrsqrt.pop %v285
          %v287 = vsub.f32 %v273, %v277
          %v288 = vmul.f32 %v287, %v286
          %v289 = vlaneseq
          %v290 = vshrl.u32 %v289, 7
          %v291 = vsub.s32 0, %v290
          %v292 = vrot.slane %v274, %v291
          %v293 = vmul.f32 %v288, %v292
          %v294 = vlaneseq
          %v295 = vshrl.u32 %v294, 7
          %v296 = vsub.s32 1, %v295
          %v297 = vrot.slane %v274, %v296
          %v298 = vadd.f32 %v293, %v297
          %v299 = vpack.c.bf16 %v298, %v298
          %300 = vst [vmem:[#allocation2] sm:$0xf] %v299
        $region52: #{tpu_custom_call.1} parent=35 // pred_fallthru
          _
        %v301 = vld [vmem:[#allocation2] sm:$0xf]
        %v302 = vld [vmem:[#allocation8] sm:$0xf]
        %v303 = vld [vmem:[#allocation8 + $0x4] sm:$0xf]
        %v304 = vld [vmem:[#allocation8 + $0x8] sm:$0xf]
        %v305 = vld [vmem:[#allocation8 + $0xc] sm:$0xf]
        %v306 = vld [vmem:[#allocation8 + $0x10] sm:$0xf]
        %v307 = vld [vmem:[#allocation8 + $0x14] sm:$0xf]
        %v308 = vld [vmem:[#allocation8 + $0x18] sm:$0xf]
        %v309 = vld [vmem:[#allocation8 + $0x1c] sm:$0xf]
        %v310 = vld [vmem:[#allocation8 + $0x20] sm:$0xf]
        %v311 = vld [vmem:[#allocation8 + $0x24] sm:$0xf]
        %v312 = vld [vmem:[#allocation8 + $0x28] sm:$0xf]
        %v313 = vld [vmem:[#allocation8 + $0x2c] sm:$0xf]
        %v314 = vld [vmem:[#allocation8 + $0x30] sm:$0xf]
        %v315 = vld [vmem:[#allocation8 + $0x34] sm:$0xf]
        %v316 = vld [vmem:[#allocation8 + $0x38] sm:$0xf]
        %v317 = vld [vmem:[#allocation8 + $0x3c] sm:$0xf]
        %v318 = vld [vmem:[%s267] sm:$0x1]
        %v320 = vlaneseq
        %v321 = vshrl.u32 %v320, 7
        %v322 = vsub.s32 0, %v321
        %v323 = vrot.slane %v318, %v322
        %v341 = vunpack.c.l.b16 %v302
        %v342 = vunpack.c.l.b16 %v303
        %v343 = vunpack.c.l.b16 %v304
        %v344 = vunpack.c.l.b16 %v305
        %v345 = vunpack.c.l.b16 %v306
        %v346 = vunpack.c.l.b16 %v307
        %v347 = vunpack.c.l.b16 %v308
        %v348 = vunpack.c.l.b16 %v309
        %v349 = vunpack.c.l.b16 %v310
        %v350 = vunpack.c.l.b16 %v311
        %v351 = vunpack.c.l.b16 %v312
        %v352 = vunpack.c.l.b16 %v313
        %v353 = vunpack.c.l.b16 %v314
        %v354 = vunpack.c.l.b16 %v315
        %v355 = vunpack.c.l.b16 %v316
        %v356 = vunpack.c.l.b16 %v317
        %v357 = vpack.c.b16 %v342, %v341
        %v358 = vpack.c.b16 %v344, %v343
        %v359 = vpack.c.b16 %v346, %v345
        %v360 = vpack.c.b16 %v348, %v347
        %v361 = vpack.c.b16 %v350, %v349
        %v362 = vpack.c.b16 %v352, %v351
        %v363 = vpack.c.b16 %v354, %v353
        %v364 = vpack.c.b16 %v356, %v355
        %373 = vmatprep.subr.bf16.mxu0 0
        %374 = vmatpush1.bf16.msra.mxu0 %v364
        %375 = vmatprep.subr.bf16.mxu0 0
        %376 = vmatpush1.bf16.msra.mxu0 %v363
        %377 = vmatprep.subr.bf16.mxu0 0
        %378 = vmatpush1.bf16.msra.mxu0 %v362
        %379 = vmatprep.subr.bf16.mxu0 0
        %380 = vmatpush1.bf16.msra.mxu0 %v361
        %381 = vmatprep.subr.bf16.mxu0 0
        %382 = vmatpush1.bf16.msra.mxu0 %v360
        %383 = vmatprep.subr.bf16.mxu0 0
        %384 = vmatpush1.bf16.msra.mxu0 %v359
        %385 = vmatprep.subr.bf16.mxu0 0
        %386 = vmatpush1.bf16.msra.mxu0 %v358
        %387 = vmatprep.subr.bf16.mxu0 0
        %388 = vmatpush1.bf16.msra.mxu0 %v357
        %389 = vmatprep.subr.bf16.mxu0 0
        %390 = vmatpush2.bf16.msra.mxu0 0
        %391 = vmatprep.subr.bf16.mxu0 0
        %392 = vmatpush2.bf16.msra.mxu0 0
        %393 = vmatprep.subr.bf16.mxu0 0
        %394 = vmatpush2.bf16.msra.mxu0 0
        %395 = vmatprep.subr.bf16.mxu0 0
        %396 = vmatpush2.bf16.msra.mxu0 0
        %397 = vmatprep.subr.bf16.mxu0 0
        %398 = vmatpush2.bf16.msra.mxu0 0
        %399 = vmatprep.subr.bf16.mxu0 0
        %400 = vmatpush2.bf16.msra.mxu0 0
        %401 = vmatprep.subr.bf16.mxu0 0
        %402 = vmatpush2.bf16.msra.mxu0 0
        %403 = vmatprep.subr.bf16.mxu0 0
        %404 = vmatpush2.bf16.msra.mxu0 0
        %405 = vmatprep.mubr.bf16.mxu0 0
        %406 = vmatmul.mubr.bf16.gmra.mxu0 %v301
        %v407 = vpop.f32.mrf.mxu0
        %v408 = vadd.f32 %v323, %v407
        %v409 = vpop.f32.mrf.mxu0
        %v410 = vpop.f32.mrf.mxu0
        %v411 = vpop.f32.mrf.mxu0
        %412 = vdwg.mxu0
        %413 = vst [vmem:[%s264] sm:$0xff] %v408
        %s414 = sand.u32 %s138, 1
        %s415 = scalar_lea.sflag [#allocation5], %s414
        %s416 = sand.u32 %s138, 1
        %s417 = smul.addr %s416, 8
        %s418 = scalar_lea.vmem [#allocation9], %s417
        // Predicated region
        $region53: #{tpu_custom_call.1} parent=35 // pred_check
          %p419 = pneg %p148
        $region54: #{tpu_custom_call.1} parent=35 // pred_check_branch
          %421 = sbr.rel (%p419) target = $region56
        $region55: #{tpu_custom_call.1} parent=35 // pred_region
          %s423 = ssub.s32 128, 128
          %424 = vsyncadd %s415, %s423
          %s425 = sadd.s32 %s27, %s26
          %s426 = smul.addr %s425, 128
          %s427 = scalar_lea.hbm %s4, %s426
          %s429 = sshll.u32 %s418, 4
          %s430 = int_to_ptr.vmem [resolvable:$true] %s429
          %432 = dma.vmem_to_hbm [thread:$0]  %s430, 128, %s427, %s415
        $region56: #{tpu_custom_call.1} parent=35 // pred_fallthru
          _
      $region36: #{tpu_custom_call.1} parent=5 // pred_fallthru
        _
      %p433 = scmp.le.s32.totalorder 2, %s17
      // Predicated region
      $region57: #{tpu_custom_call.1} parent=5 // pred_check
        %p434 = pneg %p433
      $region58: #{tpu_custom_call.1} parent=5 // pred_check_branch
        %436 = sbr.rel (%p434) target = $region60
      $region59: #{tpu_custom_call.1} parent=5 // pred_region
        %s437 = ssub.s32 %s17, 2
        // Predicated region
        $region61: #{tpu_custom_call.1} parent=59 // pred_check
          %p438 = pneg %p154
        $region62: #{tpu_custom_call.1} parent=59 // pred_check_branch
          %440 = sbr.rel (%p438) target = $region64
        $region63: #{tpu_custom_call.1} parent=59 // pred_region
          %s441 = sand.u32 %s139, 1
          %s442 = scalar_lea.sflag [#allocation5], %s441
          %s443 = sand.u32 %s139, 1
          %s444 = smul.addr %s443, 8
          %s445 = scalar_lea.vmem [#allocation9], %s444
          %446 = dma.done %s442, 128
        $region64: #{tpu_custom_call.1} parent=59 // pred_fallthru
          _
      $region60: #{tpu_custom_call.1} parent=5 // pred_fallthru
        _
    $region6: #{tpu_custom_call.1} parent=1 // loop_footer
      %s21 = sadd.s32 1, %s17
    $region7: #{tpu_custom_call.1} parent=1 // loop_footer_branch
      %16 = sbr.rel target = $region3
    $region8: #{tpu_custom_call.1} parent=1 // loop_exit
      _
    %447 = vsyncpa [#allocation4], 1
    %s448 = scalar_lea.sflag [#allocation4], 1
    %449 = vsyncpa %s448, 1
    %450 = vsyncpa [#allocation7], 1
    %451 = vsyncpa [#allocation5], 1
    %s452 = scalar_lea.sflag [#allocation5], 1
    %453 = vsyncpa %s452, 1

</llo_original>
